<compile_context>
chip_gen: v7x
topology: tpu7x:2x2x1
jax: 0.10.0
libtpu: 0.0.40
codegen_flags: <defaults>
</compile_context>

<pallas_src>
import functools

import numpy as np
import jax
import jax.numpy as jnp
from jax import lax
from jax.experimental import pallas as pl
from jax.experimental.pallas import tpu as pltpu


_VMEM_TILE_BUDGET = 48 * 1024 * 1024   # double-buffered tile budget; fits v7x 64 MiB
_VMEM_LIMIT_BYTES = 64 * 1024 * 1024   # raise the 16/32 MiB scoped default


def _round_up(x, m):
    return (x + m - 1) // m * m


def _sublane(dtype):
    # sublane packing: f32 -> 8 rows/vreg, bf16 -> 16, int8/fp8 -> 32
    return 32 // np.dtype(dtype).itemsize


def _pick_block_rows(n_rows, bytes_per_row, dtype, *, n_streamed_refs, max_rows=2048):
    """Row-tile size: as large as the (double-buffered) VMEM budget allows, sublane
    aligned, and capped at ceil(n_rows/2) so the "parallel" row axis has >= 2 grid
    steps (v7x megacore sharding)."""
    sub = _sublane(dtype)
    cap_vmem = _VMEM_TILE_BUDGET // (2 * n_streamed_refs * max(int(bytes_per_row), 1))
    cap_vmem = max(sub, cap_vmem // sub * sub)
    half = _round_up(max(-(-n_rows // 2), 1), sub)
    return max(sub, min(max_rows, cap_vmem, half))


# ---------------------------------------------------------------------------
# Portable counter-based dropout mask (integer hash, integer threshold compare)
# ---------------------------------------------------------------------------
def _dropout_keep(seed, row0, col0, shape, row_stride, thresh):
    """keep[r, c] = hash(global_index, seed) & 0x7FFFFF >= thresh  (P(keep)=1-p).
    Portable: the TPU stateful PRNG (pltpu.prng_*) has no CPU-interpreter lowering."""
    rows = lax.broadcasted_iota(jnp.int32, shape, 0) + row0
    cols = lax.broadcasted_iota(jnp.int32, shape, 1) + col0
    h = rows * jnp.int32(row_stride) + cols
    h = h ^ (seed * jnp.int32(0x3C6EF35F))               # large odd seed multiplier
    h = h ^ lax.shift_right_logical(h, jnp.int32(16))
    h = h * jnp.int32(0x7FEB352D)
    h = h ^ lax.shift_right_logical(h, jnp.int32(15))
    h = h * jnp.int32(0x46C2B2A5)
    h = h ^ lax.shift_right_logical(h, jnp.int32(16))
    return (h & jnp.int32(0x7FFFFF)) >= jnp.int32(thresh)


# ---------------------------------------------------------------------------
# Kernel 1: LayerNorm   a_2 * (x - mean) / (std + eps) + b_2   (unbiased std)
# ---------------------------------------------------------------------------
def _layernorm_kernel(x_ref, gamma_ref, beta_ref, o_ref, *, eps, inv_nm1):
    x = x_ref[...].astype(jnp.float32)                         # bf16/f32 -> f32
    mean = jnp.mean(x, axis=-1, keepdims=True)
    diff = x - mean
    var = jnp.sum(diff * diff, axis=-1, keepdims=True) * inv_nm1   # N-1 divisor
    inv = 1.0 / (jnp.sqrt(var) + eps)                          # one divide per ROW
    out = (diff * inv) * gamma_ref[...].astype(jnp.float32) \
          + beta_ref[...].astype(jnp.float32)
    o_ref[...] = out.astype(o_ref.dtype)


def layer_norm(x2d, gamma, beta, *, eps=1e-6):
    R, D = x2d.shape
    br = _pick_block_rows(R, D * x2d.dtype.itemsize, x2d.dtype, n_streamed_refs=2)
    return pl.pallas_call(
        functools.partial(_layernorm_kernel, eps=float(eps),
                          inv_nm1=1.0 / max(D - 1, 1)),
        out_shape=jax.ShapeDtypeStruct((R, D), x2d.dtype),
        grid=(pl.cdiv(R, br),),                          # ragged last block: no pad
        in_specs=[
            pl.BlockSpec((br, D), lambda i: (i, 0)),     # x row tile
            pl.BlockSpec((1, D), lambda i: (0, 0)),      # gamma (resident)
            pl.BlockSpec((1, D), lambda i: (0, 0)),      # beta  (resident)
        ],
        out_specs=pl.BlockSpec((br, D), lambda i: (i, 0)),
        compiler_params=pltpu.CompilerParams(
            dimension_semantics=("parallel",),
            vmem_limit_bytes=_VMEM_LIMIT_BYTES),
    )(x2d, gamma.reshape(1, D), beta.reshape(1, D))


# ---------------------------------------------------------------------------
# Kernel 2: residual add + (inverted) dropout
# ---------------------------------------------------------------------------
def _residual_dropout_kernel(seed_ref, x_ref, y_ref, o_ref, *,
                             dropout_p, thresh, block_rows, n_cols):
    x = x_ref[...].astype(jnp.float32)
    y = y_ref[...].astype(jnp.float32)
    if dropout_p > 0.0:
        keep = _dropout_keep(seed_ref[0], pl.program_id(0) * block_rows, 0,
                             y.shape, n_cols, thresh)
        y = jnp.where(keep, y, 0.0) * jnp.float32(1.0 / (1.0 - dropout_p))
    o_ref[...] = (x + y).astype(o_ref.dtype)


def residual_add_dropout(x2d, y2d, *, dropout_p=0.0, seed=0):
    R, D = x2d.shape
    br = _pick_block_rows(R, D * x2d.dtype.itemsize, x2d.dtype, n_streamed_refs=3)
    thresh = int(round(float(dropout_p) * (1 << 23)))
    seed_arr = jnp.asarray([seed], dtype=jnp.int32)
    # y is a dead intermediate after this call -> alias it to the output
    # (operand 0 is the scalar-prefetch seed, so y2d is operand 2).
    aliases = {2: 0} if (y2d.dtype == x2d.dtype and y2d.shape == x2d.shape) else {}
    return pl.pallas_call(
        functools.partial(_residual_dropout_kernel, dropout_p=float(dropout_p),
                          thresh=thresh, block_rows=br, n_cols=D),
        out_shape=jax.ShapeDtypeStruct((R, D), x2d.dtype),
        grid_spec=pltpu.PrefetchScalarGridSpec(
            num_scalar_prefetch=1,                       # seed -> SMEM
            grid=(pl.cdiv(R, br),),
            in_specs=[pl.BlockSpec((br, D), lambda i, *_: (i, 0)),
                      pl.BlockSpec((br, D), lambda i, *_: (i, 0))],
            out_specs=pl.BlockSpec((br, D), lambda i, *_: (i, 0)),
        ),
        input_output_aliases=aliases,
        compiler_params=pltpu.CompilerParams(
            dimension_semantics=("parallel",),
            vmem_limit_bytes=_VMEM_LIMIT_BYTES),
    )(seed_arr, x2d, y2d)


# ---------------------------------------------------------------------------
# Fused path for a Linear sublayer:
#   out = x + dropout( LayerNorm(x) @ W + b )   in ONE kernel
# ---------------------------------------------------------------------------
def _fused_ln_linear_residual_kernel(seed_ref, xrow_ref, gamma_ref, beta_ref,
                                     w_ref, b_ref, xres_ref, o_ref, *,
                                     eps, inv_nm1, dropout_p, thresh,
                                     block_m, block_n, n_cols):
    # LayerNorm prologue on the full-width row tile (K axis kept whole).
    xr = xrow_ref[...].astype(jnp.float32)
    mean = jnp.mean(xr, axis=-1, keepdims=True)
    diff = xr - mean
    var = jnp.sum(diff * diff, axis=-1, keepdims=True) * inv_nm1
    inv = 1.0 / (jnp.sqrt(var) + eps)
    normed = (diff * inv) * gamma_ref[...].astype(jnp.float32) \
             + beta_ref[...].astype(jnp.float32)
    # Linear sublayer on the MXU.
    y = jnp.dot(normed.astype(w_ref.dtype), w_ref[...],
                preferred_element_type=jnp.float32)
    y = y + b_ref[...].astype(jnp.float32)
    # Residual-add + inverted dropout epilogue.
    if dropout_p > 0.0:
        keep = _dropout_keep(seed_ref[0],
                             pl.program_id(0) * block_m,
                             pl.program_id(1) * block_n,
                             y.shape, n_cols, thresh)
        y = jnp.where(keep, y, 0.0) * jnp.float32(1.0 / (1.0 - dropout_p))
    o_ref[...] = (xres_ref[...].astype(jnp.float32) + y).astype(o_ref.dtype)


def fused_ln_linear_residual_dropout(x2d, w, b, gamma, beta, *,
                                     eps=1e-6, dropout_p=0.0, seed=0):
    R, D = x2d.shape
    K, N = w.shape
    assert K == D and N == D, "residual connection requires a same-size sublayer"
    itemsize = x2d.dtype.itemsize
    tn = 512 if (N % 128 == 0 and N > 512) else N          # lane-dense column tile
    tm = _pick_block_rows(R, (D + 2 * tn) * itemsize, x2d.dtype,
                          n_streamed_refs=1, max_rows=1024)
    thresh = int(round(float(dropout_p) * (1 << 23)))
    seed_arr = jnp.asarray([seed], dtype=jnp.int32)
    return pl.pallas_call(
        functools.partial(_fused_ln_linear_residual_kernel, eps=float(eps),
                          inv_nm1=1.0 / max(D - 1, 1), dropout_p=float(dropout_p),
                          thresh=thresh, block_m=tm, block_n=tn, n_cols=N),
        out_shape=jax.ShapeDtypeStruct((R, N), x2d.dtype),
        grid_spec=pltpu.PrefetchScalarGridSpec(
            num_scalar_prefetch=1,
            grid=(pl.cdiv(R, tm), pl.cdiv(N, tn)),
            in_specs=[
                pl.BlockSpec((tm, D), lambda i, j, *_: (i, 0)),   # x rows (LN input)
                pl.BlockSpec((1, D), lambda i, j, *_: (0, 0)),    # gamma
                pl.BlockSpec((1, D), lambda i, j, *_: (0, 0)),    # beta
                pl.BlockSpec((D, tn), lambda i, j, *_: (0, j)),   # W column tile
                pl.BlockSpec((1, tn), lambda i, j, *_: (0, j)),   # bias
                pl.BlockSpec((tm, tn), lambda i, j, *_: (i, j)),  # x (residual slice)
            ],
            out_specs=pl.BlockSpec((tm, tn), lambda i, j, *_: (i, j)),
        ),
        compiler_params=pltpu.CompilerParams(
            dimension_semantics=("parallel", "parallel"),
            vmem_limit_bytes=_VMEM_LIMIT_BYTES),
    )(seed_arr, x2d, gamma.reshape(1, D), beta.reshape(1, D),
      w, b.reshape(1, N), x2d)


# ---------------------------------------------------------------------------
# Module forward: x + dropout(sublayer(LayerNorm(x)))
# ---------------------------------------------------------------------------
def residual_skip_connection_with_layer_norm(
        x, sublayer, gamma, beta, *, eps=1e-6, dropout_p=0.0, dropout_seed=0):
    """x: (..., D).  `sublayer` is either a (W, b) pair (fully fused single-kernel
    path) or an arbitrary callable (LN kernel -> callable -> residual kernel)."""
    shape = x.shape
    D = shape[-1]
    x2d = x.reshape(-1, D)
    if isinstance(sublayer, (tuple, list)) and len(sublayer) == 2:
        w, b = sublayer
        out2d = fused_ln_linear_residual_dropout(
            x2d, w, b, gamma, beta, eps=eps, dropout_p=dropout_p, seed=dropout_seed)
    else:
        normed = layer_norm(x2d, gamma, beta, eps=eps)
        # TODO(synk): an arbitrary nn.Module sublayer has no generic Pallas
        # equivalent; it is applied as a plain JAX callable between the two kernels.
        y = sublayer(normed.reshape(shape)).reshape(-1, D)
        out2d = residual_add_dropout(x2d, y, dropout_p=dropout_p, seed=dropout_seed)
    return out2d.reshape(shape)


if __name__ == "__main__":
    key = jax.random.PRNGKey(0)
    k_x, k_g, k_b, k_w, k_wb = jax.random.split(key, 5)

    batch, seq, hidden = 2, 8, 128     # hidden multiple of 128 -> lane-dense stores

    x = jax.random.normal(k_x, (batch, seq, hidden), dtype=jnp.float32)
    gamma = 1.0 + 0.1 * jax.random.normal(k_g, (hidden,), dtype=jnp.float32)
    beta = 0.1 * jax.random.normal(k_b, (hidden,), dtype=jnp.float32)
    w = jax.random.normal(k_w, (hidden, hidden), dtype=jnp.float32) / jnp.sqrt(hidden)
    wb = 0.1 * jax.random.normal(k_wb, (hidden,), dtype=jnp.float32)
    linear = lambda t: jnp.dot(t, w) + wb

    # pure-JAX reference (torch semantics: unbiased std, divide by (std + eps))
    mean = jnp.mean(x, axis=-1, keepdims=True)
    std = jnp.std(x, axis=-1, keepdims=True, ddof=1)
    normed_ref = gamma * (x - mean) / (std + 1e-6) + beta
    ref = x + linear(normed_ref)

    # 1) generic path (arbitrary callable sublayer), eval mode (dropout 0)
    out_gen = residual_skip_connection_with_layer_norm(
        x, linear, gamma, beta, eps=1e-6, dropout_p=0.0)
    jax.block_until_ready(out_gen)
    assert out_gen.shape == x.shape
    assert jnp.allclose(out_gen, ref, atol=1e-4, rtol=1e-4), \
        float(jnp.max(jnp.abs(out_gen - ref)))

    # 2) fused Linear path, eval mode (looser tol: in-kernel MXU matmul precision)
    out_fused = residual_skip_connection_with_layer_norm(
        x, (w, wb), gamma, beta, eps=1e-6, dropout_p=0.0)
    jax.block_until_ready(out_fused)
    assert out_fused.shape == x.shape
    assert jnp.allclose(out_fused, ref, atol=2e-2, rtol=2e-2), \
        float(jnp.max(jnp.abs(out_fused - ref)))

    # 3) training mode (dropout 0.5): exercise the in-kernel dropout mask
    out_drop = residual_skip_connection_with_layer_norm(
        x, (w, wb), gamma, beta, eps=1e-6, dropout_p=0.5, dropout_seed=123)
    jax.block_until_ready(out_drop)
    assert out_drop.shape == x.shape
    assert bool(jnp.all(jnp.isfinite(out_drop)))
    drop_frac = float(jnp.mean((out_drop == x).astype(jnp.float32)))
    assert 0.2 < drop_frac < 0.8, drop_frac          # ~= dropout_p

    out_drop2 = residual_skip_connection_with_layer_norm(
        x, linear, gamma, beta, eps=1e-6, dropout_p=0.5, dropout_seed=123)
    jax.block_until_ready(out_drop2)
    assert bool(jnp.all(jnp.isfinite(out_drop2)))

    print("KERNEL_OK")
</pallas_src>

<mosaic_0001>
module attributes {stable_mosaic.version = 11 : i64} {
  func.func @_layernorm_kernel(%arg0: i32, %arg1: memref<8x128xf32, #tpu.memory_space<vmem>>, %arg2: memref<1x128xf32, #tpu.memory_space<vmem>>, %arg3: memref<1x128xf32, #tpu.memory_space<vmem>>, %arg4: memref<8x128xf32, #tpu.memory_space<vmem>>) attributes {dimension_semantics = [#tpu.dimension_semantics<parallel>], iteration_bounds = array<i64: 2>, scalar_prefetch = 0 : i64, scratch_operands = 0 : i64, tpu.core_type = #tpu.core_type<tc>, window_params = [{transform_indices = @transform_0, window_bounds = array<i64: 8, 128>}, {pipeline_mode = #tpu.pipeline_mode<synchronous>, transform_indices = @transform_1, window_bounds = array<i64: 1, 128>}, {pipeline_mode = #tpu.pipeline_mode<synchronous>, transform_indices = @transform_2, window_bounds = array<i64: 1, 128>}, {transform_indices = @transform_3, window_bounds = array<i64: 8, 128>}]} {
    %c0 = arith.constant 0 : index
    %c0_0 = arith.constant 0 : index
    %0 = vector.load %arg1[%c0, %c0_0] : memref<8x128xf32, #tpu.memory_space<vmem>>, vector<8x128xf32>
    %cst = arith.constant dense<0.000000e+00> : vector<8xf32>
    %1 = vector.multi_reduction <add>, %0, %cst [1] : vector<8x128xf32> to vector<8xf32>
    %2 = vector.shape_cast %1 : vector<8xf32> to vector<8x1xf32>
    %cst_1 = arith.constant 1.280000e+02 : f32
    %3 = vector.broadcast %cst_1 : f32 to vector<8x1xf32>
    %4 = arith.divf %2, %3 : vector<8x1xf32>
    %5 = vector.broadcast %4 : vector<8x1xf32> to vector<8x128xf32>
    %6 = arith.subf %0, %5 : vector<8x128xf32>
    %7 = arith.mulf %6, %6 : vector<8x128xf32>
    %cst_2 = arith.constant dense<0.000000e+00> : vector<8xf32>
    %8 = vector.multi_reduction <add>, %7, %cst_2 [1] : vector<8x128xf32> to vector<8xf32>
    %9 = vector.shape_cast %8 : vector<8xf32> to vector<8x1xf32>
    %cst_3 = arith.constant 0.00787401571 : f32
    %10 = vector.broadcast %cst_3 : f32 to vector<8x1xf32>
    %11 = arith.mulf %9, %10 : vector<8x1xf32>
    %12 = math.sqrt %11 : vector<8x1xf32>
    %cst_4 = arith.constant 9.99999997E-7 : f32
    %13 = vector.broadcast %cst_4 : f32 to vector<8x1xf32>
    %14 = arith.addf %12, %13 : vector<8x1xf32>
    %cst_5 = arith.constant 1.000000e+00 : f32
    %15 = vector.broadcast %cst_5 : f32 to vector<8x1xf32>
    %16 = arith.divf %15, %14 : vector<8x1xf32>
    %17 = vector.broadcast %16 : vector<8x1xf32> to vector<8x128xf32>
    %18 = arith.mulf %6, %17 : vector<8x128xf32>
    %c0_6 = arith.constant 0 : index
    %c0_7 = arith.constant 0 : index
    %19 = vector.load %arg2[%c0_6, %c0_7] : memref<1x128xf32, #tpu.memory_space<vmem>>, vector<1x128xf32>
    %20 = vector.broadcast %19 : vector<1x128xf32> to vector<8x128xf32>
    %21 = arith.mulf %18, %20 : vector<8x128xf32>
    %c0_8 = arith.constant 0 : index
    %c0_9 = arith.constant 0 : index
    %22 = vector.load %arg3[%c0_8, %c0_9] : memref<1x128xf32, #tpu.memory_space<vmem>>, vector<1x128xf32>
    %23 = vector.broadcast %22 : vector<1x128xf32> to vector<8x128xf32>
    %24 = arith.addf %21, %23 : vector<8x128xf32>
    %c0_10 = arith.constant 0 : index
    %c0_11 = arith.constant 0 : index
    %25 = vector.load %arg4[%c0_10, %c0_11] : memref<8x128xf32, #tpu.memory_space<vmem>>, vector<8x128xf32>
    tpu.vector_store %arg4[%c0_10, %c0_11], %24 {strides = array<i32>} : memref<8x128xf32, #tpu.memory_space<vmem>>, vector<8x128xf32>,
    return
  }
  func.func @transform_0(%arg0: i32) -> (i32, i32) {
    %c0_i32 = arith.constant 0 : i32
    %c0_i32_0 = arith.constant 0 : i32
    return %arg0, %c0_i32 : i32, i32
  }
  func.func @transform_1(%arg0: i32) -> (i32, i32) {
    %c0_i32 = arith.constant 0 : i32
    %c0_i32_0 = arith.constant 0 : i32
    %c0_i32_1 = arith.constant 0 : i32
    return %c0_i32, %c0_i32_0 : i32, i32
  }
  func.func @transform_2(%arg0: i32) -> (i32, i32) {
    %c0_i32 = arith.constant 0 : i32
    %c0_i32_0 = arith.constant 0 : i32
    %c0_i32_1 = arith.constant 0 : i32
    return %c0_i32, %c0_i32_0 : i32, i32
  }
  func.func @transform_3(%arg0: i32) -> (i32, i32) {
    %c0_i32 = arith.constant 0 : i32
    %c0_i32_0 = arith.constant 0 : i32
    return %arg0, %c0_i32 : i32, i32
  }
}

</mosaic_0001>

<llo_original>
// kernel: tpu_custom_call.1
$region0: #{tpu_custom_call.1}
  #allocation0 [shape = 'u32[]', space=smem, size = 0x4, offset = 0x4, fixed_abs, tag = 'smem constant byte address 0x4 - core index']
  #allocation1 [shape = 'u32[144,128]{1,0:T(1,128)}', space=vmem, size = 0x12000, scoped, tag = 'internal scratch']
  %s0 = inlined_call_operand.hbm [shape: f32[16,128], index: 0, kind: input, shape index: {}]
  %s1 = inlined_call_operand.hbm [shape: f32[1,128], index: 1, kind: input, shape index: {}]
  %s2 = inlined_call_operand.hbm [shape: f32[1,128], index: 2, kind: input, shape index: {}]
  %s3 = inlined_call_operand.hbm [shape: f32[16,128], index: 3, kind: output, shape index: {}]
  %s4 = sld [smem:[#allocation0]]
  $region57: #{tpu_custom_call.1} parent=0
    _
  %s6 = ssub.s32 1, %s4
  %s7 = scalar_select 0, %s6, %s4
  $region1: #{tpu_custom_call.1} parent=0
    #allocation2 [shape = 'u8[8192]{0}', space=vmem, size = 0x2000, scoped, tag = 'input window, operand 0']
    #allocation3 [shape = 's32[2]{0}', space=sflag, size = 0x8, scoped, tag = 'scoped memory for tpu_custom_call.1']
    #allocation4 [shape = 's32[2]{0}', space=sflag, size = 0x8, scoped, tag = 'scoped memory for tpu_custom_call.1']
    #allocation5 [shape = 'u8[512]{0}', space=vmem, size = 0x400, scoped, tag = 'input window, operand 1, single buffered']
    #allocation6 [shape = 's32[1]{0}', space=sflag, size = 0x4, scoped, tag = 'scoped memory for tpu_custom_call.1']
    #allocation7 [shape = 'u8[512]{0}', space=vmem, size = 0x400, scoped, tag = 'input window, operand 2, single buffered']
    #allocation8 [shape = 'u8[8192]{0}', space=vmem, size = 0x2000, scoped, tag = 'output window, operand 0']
    %8 = vsyncpa [#allocation3], 0
    %s9 = scalar_lea.sflag [#allocation3], 1
    %10 = vsyncpa %s9, 0
    %11 = vsyncpa [#allocation6], 0
    %12 = vsyncpa [#allocation4], 0
    %s13 = scalar_lea.sflag [#allocation4], 1
    %14 = vsyncpa %s13, 0
    loop: start=0, step=1, limit=4
    $region2: #{tpu_custom_call.1} parent=1 // loop_pre_header
      _
    $region3: #{tpu_custom_call.1} parent=1 // loop_header
      %s16 = sphi 0, %s20
      %p17 = scmp.ge.s32.totalorder %s16, 4
      %s26 = sphi 0, %s28
      %s29 = sphi 0, %s26
      %s30 = sphi 0, %s29
      %s46 = sphi 0, %s30
      %s50 = sphi 0, %s50
      %s52 = sphi 0, %s50
      %s53 = sphi 0, %s52
      %s67 = sphi 0, %s53
      %s71 = sphi 0, %s71
      %s73 = sphi 0, %s71
      %s74 = sphi 0, %s73
      %s88 = sphi 0, %s74
      %s94 = sphi 0, %s96
      %s97 = sphi 0, %s94
      %s98 = sphi 0, %s97
      %s114 = sphi 0, %s98
    $region4: #{tpu_custom_call.1} parent=1 // loop_header_branch
      %19 = sbr.rel (%p17) target = $region8
    $region5: #{tpu_custom_call.1} parent=1 // loop_body
      %s21 = ssub.s32 %s16, 1
      %s22 = ssub.s32 %s16, 2
      %s23 = sadd.s32 %s16, 1
      %s24 = ssub.s32 %s16, %s23
      %p25 = scmp.eq.s32.totalorder %s24, 0
      %s27 = sadd.s32 %s26, 1
      %s28 = scalar_select %p25, %s26, %s27
      %p31 = pneg %p25
      %p32 = scmp.eq.s32.totalorder %s16, 1
      %p33 = por %p31, %p32
      %p34 = scmp.ne.s32.totalorder %s26, %s29
      %p35 = scmp.eq.s32.totalorder %s16, 0
      %p36 = por %p34, %p35
      %p37 = scmp.ne.s32.totalorder %s26, %s29
      %p38 = scmp.eq.s32.totalorder %s21, 1
      %p39 = por %p37, %p38
      %p40 = scmp.ne.s32.totalorder %s29, %s30
      %p41 = scmp.eq.s32.totalorder %s21, 0
      %p42 = por %p40, %p41
      %p43 = scmp.ne.s32.totalorder %s29, %s30
      %p44 = scmp.eq.s32.totalorder %s22, 1
      %p45 = por %p43, %p44
      %p47 = scmp.ne.s32.totalorder %s30, %s46
      %p48 = scmp.eq.s32.totalorder %s22, 0
      %p49 = por %p47, %p48
      %s51 = sadd.s32 %s50, 1
      %p54 = scmp.eq.s32.totalorder %s16, 1
      %p55 = scmp.ne.s32.totalorder %s50, %s52
      %p56 = scmp.eq.s32.totalorder %s16, 0
      %p57 = por %p55, %p56
      %p58 = scmp.ne.s32.totalorder %s50, %s52
      %p59 = scmp.eq.s32.totalorder %s21, 1
      %p60 = por %p58, %p59
      %p61 = scmp.ne.s32.totalorder %s52, %s53
      %p62 = scmp.eq.s32.totalorder %s21, 0
      %p63 = por %p61, %p62
      %p64 = scmp.ne.s32.totalorder %s52, %s53
      %p65 = scmp.eq.s32.totalorder %s22, 1
      %p66 = por %p64, %p65
      %p68 = scmp.ne.s32.totalorder %s53, %s67
      %p69 = scmp.eq.s32.totalorder %s22, 0
      %p70 = por %p68, %p69
      %s72 = sadd.s32 %s71, 1
      %p75 = scmp.eq.s32.totalorder %s16, 1
      %p76 = scmp.ne.s32.totalorder %s71, %s73
      %p77 = scmp.eq.s32.totalorder %s16, 0
      %p78 = por %p76, %p77
      %p79 = scmp.ne.s32.totalorder %s71, %s73
      %p80 = scmp.eq.s32.totalorder %s21, 1
      %p81 = por %p79, %p80
      %p82 = scmp.ne.s32.totalorder %s73, %s74
      %p83 = scmp.eq.s32.totalorder %s21, 0
      %p84 = por %p82, %p83
      %p85 = scmp.ne.s32.totalorder %s73, %s74
      %p86 = scmp.eq.s32.totalorder %s22, 1
      %p87 = por %p85, %p86
      %p89 = scmp.ne.s32.totalorder %s74, %s88
      %p90 = scmp.eq.s32.totalorder %s22, 0
      %p91 = por %p89, %p90
      %s92 = ssub.s32 %s16, %s23
      %p93 = scmp.eq.s32.totalorder %s92, 0
      %s95 = sadd.s32 %s94, 1
      %s96 = scalar_select %p93, %s94, %s95
      %p99 = pneg %p93
      %p100 = scmp.eq.s32.totalorder %s16, 1
      %p101 = por %p99, %p100
      %p102 = scmp.ne.s32.totalorder %s94, %s97
      %p103 = scmp.eq.s32.totalorder %s16, 0
      %p104 = por %p102, %p103
      %p105 = scmp.ne.s32.totalorder %s94, %s97
      %p106 = scmp.eq.s32.totalorder %s21, 1
      %p107 = por %p105, %p106
      %p108 = scmp.ne.s32.totalorder %s97, %s98
      %p109 = scmp.eq.s32.totalorder %s21, 0
      %p110 = por %p108, %p109
      %p111 = scmp.ne.s32.totalorder %s97, %s98
      %p112 = scmp.eq.s32.totalorder %s22, 1
      %p113 = por %p111, %p112
      %p115 = scmp.ne.s32.totalorder %s98, %s114
      %p116 = scmp.eq.s32.totalorder %s22, 0
      %p117 = por %p115, %p116
      %p118 = scmp.le.s32.totalorder 1, %s16
      %p119 = scmp.lt.s32.totalorder %s16, 3
      %p120 = pnand %p118, %p119
      %p121 = pneg %p120
      // Predicated region
      $region9: #{tpu_custom_call.1} parent=5 // pred_check
        _
      $region10: #{tpu_custom_call.1} parent=5 // pred_check_branch
        %123 = sbr.rel (%p120) target = $region12
      $region11: #{tpu_custom_call.1} parent=5 // pred_region
        %s124 = ssub.s32 %s16, 1
        // Predicated region
        $region13: #{tpu_custom_call.1} parent=11 // pred_check
          %p125 = pneg %p63
        $region14: #{tpu_custom_call.1} parent=11 // pred_check_branch
          %127 = sbr.rel (%p125) target = $region16
        $region15: #{tpu_custom_call.1} parent=11 // pred_region
          %s129 = ssub.s32 16, 16
          %130 = vsyncadd [#allocation6], %s129
          %s132 = sshll.u32 [#allocation5], 4
          %s133 = int_to_ptr.vmem [resolvable:$true] %s132
          %135 = dma.hbm_to_vmem [thread:$0]  %s1, 16, %s133, [#allocation6]
        $region16: #{tpu_custom_call.1} parent=11 // pred_fallthru
          _
        // Predicated region
        $region17: #{tpu_custom_call.1} parent=11 // pred_check
          %p136 = pneg %p84
        $region18: #{tpu_custom_call.1} parent=11 // pred_check_branch
          %138 = sbr.rel (%p136) target = $region20
        $region19: #{tpu_custom_call.1} parent=11 // pred_region
          %s140 = ssub.s32 16, 16
          %141 = vsyncadd [#allocation6], %s140
          %s143 = sshll.u32 [#allocation7], 4
          %s144 = int_to_ptr.vmem [resolvable:$true] %s143
          %146 = dma.hbm_to_vmem [thread:$0]  %s2, 16, %s144, [#allocation6]
        $region20: #{tpu_custom_call.1} parent=11 // pred_fallthru
          _
      $region12: #{tpu_custom_call.1} parent=5 // pred_fallthru
        _
      %p147 = scmp.lt.s32.totalorder %s16, 2
      // Predicated region
      $region21: #{tpu_custom_call.1} parent=5 // pred_check
        %p148 = pneg %p147
      $region22: #{tpu_custom_call.1} parent=5 // pred_check_branch
        %150 = sbr.rel (%p148) target = $region24
      $region23: #{tpu_custom_call.1} parent=5 // pred_region
        // Predicated region
        $region25: #{tpu_custom_call.1} parent=23 // pred_check
          %p151 = pneg %p36
        $region26: #{tpu_custom_call.1} parent=23 // pred_check_branch
          %153 = sbr.rel (%p151) target = $region28
        $region27: #{tpu_custom_call.1} parent=23 // pred_region
          %s154 = sand.u32 %s26, 1
          %s155 = scalar_lea.sflag [#allocation3], %s154
          %s156 = sand.u32 %s26, 1
          %s157 = smul.addr %s156, 8
          %s158 = scalar_lea.vmem [#allocation2], %s157
          %s160 = ssub.s32 128, 128
          %161 = vsyncadd %s155, %s160
          %s162 = smul.addr %s16, 128
          %s163 = scalar_lea.hbm %s0, %s162
          %s165 = sshll.u32 %s158, 4
          %s166 = int_to_ptr.vmem [resolvable:$true] %s165
          %168 = dma.hbm_to_vmem [thread:$0]  %s163, 128, %s166, %s155
        $region28: #{tpu_custom_call.1} parent=23 // pred_fallthru
          _
      $region24: #{tpu_custom_call.1} parent=5 // pred_fallthru
        _
      %p169 = scmp.le.s32.totalorder 1, %s16
      %p170 = scmp.lt.s32.totalorder %s16, 3
      %p171 = pnand %p169, %p170
      %p172 = pneg %p171
      // Predicated region
      $region29: #{tpu_custom_call.1} parent=5 // pred_check
        _
      $region30: #{tpu_custom_call.1} parent=5 // pred_check_branch
        %174 = sbr.rel (%p171) target = $region32
      $region31: #{tpu_custom_call.1} parent=5 // pred_region
        %s175 = ssub.s32 %s16, 1
        %s176 = sand.u32 %s29, 1
        %s177 = scalar_lea.sflag [#allocation3], %s176
        %s178 = sand.u32 %s29, 1
        %s179 = smul.addr %s178, 8
        %s180 = scalar_lea.vmem [#allocation2], %s179
        // Predicated region
        $region33: #{tpu_custom_call.1} parent=31 // pred_check
          %p181 = pneg %p42
        $region34: #{tpu_custom_call.1} parent=31 // pred_check_branch
          %183 = sbr.rel (%p181) target = $region36
        $region35: #{tpu_custom_call.1} parent=31 // pred_region
          %184 = dma.done %s177, 128
        $region36: #{tpu_custom_call.1} parent=31 // pred_fallthru
          _
        // Predicated region
        $region37: #{tpu_custom_call.1} parent=31 // pred_check
          %p185 = pneg %p63
        $region38: #{tpu_custom_call.1} parent=31 // pred_check_branch
          %187 = sbr.rel (%p185) target = $region40
        $region39: #{tpu_custom_call.1} parent=31 // pred_region
          %188 = dma.done [#allocation6], 16
        $region40: #{tpu_custom_call.1} parent=31 // pred_fallthru
          _
        // Predicated region
        $region41: #{tpu_custom_call.1} parent=31 // pred_check
          %p189 = pneg %p84
        $region42: #{tpu_custom_call.1} parent=31 // pred_check_branch
          %191 = sbr.rel (%p189) target = $region44
        $region43: #{tpu_custom_call.1} parent=31 // pred_region
          %192 = dma.done [#allocation6], 16
        $region44: #{tpu_custom_call.1} parent=31 // pred_fallthru
          _
        %s193 = sand.u32 %s29, 1
        %s194 = scalar_lea.sflag [#allocation3], %s193
        %s195 = sand.u32 %s29, 1
        %s196 = smul.addr %s195, 8
        %s197 = scalar_lea.vmem [#allocation2], %s196
        %p198 = pneg %p42
        %p199 = pneg %p39
        %p200 = pneg %p63
        %p201 = pneg %p60
        %p202 = pneg %p84
        %p203 = pneg %p81
        %p204 = pneg %p110
        %p205 = pneg %p107
        %s206 = sand.u32 %s97, 1
        %s207 = scalar_lea.sflag [#allocation4], %s206
        %s208 = sand.u32 %s97, 1
        %s209 = smul.addr %s208, 8
        %s210 = scalar_lea.vmem [#allocation8], %s209
        %v211 = vld [vmem:[%s180] sm:$0xff]
        %212 = vadd.xlane.f32.xlu0 %v211
        %v213 = vpop.xlane.xlu0 %212
        %v214 = vrcp.pop 128.0
        %v215 = vmul.f32 %v213, %v214
        %v216 = vsub.f32 %v211, %v215
        %v217 = vmul.f32 %v216, %v216
        %218 = vadd.xlane.f32.xlu0 %v217
        %v219 = vpop.xlane.xlu0 %218
        %v220 = vmul.f32 %v219, 0.007874016
        %v221 = vrsqrt.pop %v220
        %v222 = vmul.f32 %v220, %v221
        %vm223 = vcmp.eq.f32.partialorder %v220, inf
        %v224 = vsel %vm223, %v220, %v222
        %vm225 = vcmp.eq.f32.partialorder %v220, 0.0
        %v226 = vand.u32 %v220, 2147483648
        %v227 = vsel %vm225, %v226, %v224
        %v228 = vadd.f32 %v227, 1e-06
        %v229 = vrcp.pop %v228
        %v230 = vmul.f32 1.0, %v229
        %v231 = vmul.f32 %v216, %v230
        %v232 = vld [vmem:[#allocation5] sm:$0x1]
        %v234 = vlaneseq
        %v235 = vshrl.u32 %v234, 7
        %v236 = vsub.s32 0, %v235
        %v237 = vrot.slane %v232, %v236
        %v239 = vmul.f32 %v231, %v237
        %v240 = vld [vmem:[#allocation7] sm:$0x1]
        %v242 = vlaneseq
        %v243 = vshrl.u32 %v242, 7
        %v244 = vsub.s32 0, %v243
        %v245 = vrot.slane %v240, %v244
        %v247 = vadd.f32 %v239, %v245
        %248 = vst [vmem:[%s210] sm:$0xff] %v247
        %s249 = sand.u32 %s97, 1
        %s250 = scalar_lea.sflag [#allocation4], %s249
        %s251 = sand.u32 %s97, 1
        %s252 = smul.addr %s251, 8
        %s253 = scalar_lea.vmem [#allocation8], %s252
        // Predicated region
        $region45: #{tpu_custom_call.1} parent=31 // pred_check
          %p254 = pneg %p107
        $region46: #{tpu_custom_call.1} parent=31 // pred_check_branch
          %256 = sbr.rel (%p254) target = $region48
        $region47: #{tpu_custom_call.1} parent=31 // pred_region
          %s258 = ssub.s32 128, 128
          %259 = vsyncadd %s250, %s258
          %s260 = smul.addr %s21, 128
          %s261 = scalar_lea.hbm %s3, %s260
          %s263 = sshll.u32 %s253, 4
          %s264 = int_to_ptr.vmem [resolvable:$true] %s263
          %266 = dma.vmem_to_hbm [thread:$0]  %s264, 128, %s261, %s250
        $region48: #{tpu_custom_call.1} parent=31 // pred_fallthru
          _
      $region32: #{tpu_custom_call.1} parent=5 // pred_fallthru
        _
      %p267 = scmp.le.s32.totalorder 2, %s16
      // Predicated region
      $region49: #{tpu_custom_call.1} parent=5 // pred_check
        %p268 = pneg %p267
      $region50: #{tpu_custom_call.1} parent=5 // pred_check_branch
        %270 = sbr.rel (%p268) target = $region52
      $region51: #{tpu_custom_call.1} parent=5 // pred_region
        %s271 = ssub.s32 %s16, 2
        // Predicated region
        $region53: #{tpu_custom_call.1} parent=51 // pred_check
          %p272 = pneg %p113
        $region54: #{tpu_custom_call.1} parent=51 // pred_check_branch
          %274 = sbr.rel (%p272) target = $region56
        $region55: #{tpu_custom_call.1} parent=51 // pred_region
          %s275 = sand.u32 %s98, 1
          %s276 = scalar_lea.sflag [#allocation4], %s275
          %s277 = sand.u32 %s98, 1
          %s278 = smul.addr %s277, 8
          %s279 = scalar_lea.vmem [#allocation8], %s278
          %280 = dma.done %s276, 128
        $region56: #{tpu_custom_call.1} parent=51 // pred_fallthru
          _
      $region52: #{tpu_custom_call.1} parent=5 // pred_fallthru
        _
    $region6: #{tpu_custom_call.1} parent=1 // loop_footer
      %s20 = sadd.s32 1, %s16
    $region7: #{tpu_custom_call.1} parent=1 // loop_footer_branch
      %15 = sbr.rel target = $region3
    $region8: #{tpu_custom_call.1} parent=1 // loop_exit
      _
    %281 = vsyncpa [#allocation3], 1
    %s282 = scalar_lea.sflag [#allocation3], 1
    %283 = vsyncpa %s282, 1
    %284 = vsyncpa [#allocation6], 1
    %285 = vsyncpa [#allocation4], 1
    %s286 = scalar_lea.sflag [#allocation4], 1
    %287 = vsyncpa %s286, 1

</llo_original>
